<compile_context>
chip_gen: v7x
topology: tpu7x:2x2x1
jax: 0.10.0
libtpu: 0.0.40
codegen_flags: <defaults>
</compile_context>

<pallas_src>
import functools

import jax
import jax.numpy as jnp
from jax.experimental import pallas as pl
from jax.experimental.pallas import tpu as pltpu

BN_EPS = 1e-4
LANE = 128


def _round_up(v, m):
    return ((v + m - 1) // m) * m


# ----------------------------------------------------------------------------
# Pass 1: acc = sign(patches) @ sign(w)  (bf16 operands are exact {-1,0,+1},
#         f32 accumulate on the MXU).  Emit per-tile (sum(acc), sum(acc^2))
#         only.  Scale / bias / padding-row masking are intentionally absent:
#         acc is exactly integer-valued so the sums are exact, padded zero
#         rows contribute exactly 0, and bias cancels in training-mode BN.
# ----------------------------------------------------------------------------
def _conv_stats_kernel(p_ref, w_ref, stats_ref):
    acc = jnp.dot(p_ref[...], w_ref[...], preferred_element_type=jnp.float32)
    s = jnp.sum(acc, axis=0, keepdims=True)            # (1, O_pad)
    sq = jnp.sum(acc * acc, axis=0, keepdims=True)     # (1, O_pad)
    stats_ref[...] = jnp.concatenate([s, sq], axis=0)[None, :, :]


# ----------------------------------------------------------------------------
# Pass 2: recompute the matmul and fuse XNOR scale + conv bias + BN affine +
#         ReLU into a single HBM write of the final (M, O) result:
#             out = relu(acc * a + b)
#         with a = scale*gamma*inv_std and b = beta - scale*mean_acc*gamma*inv
#         folded per output channel (bias cancels against the batch mean).
# ----------------------------------------------------------------------------
def _conv_bn_relu_kernel(p_ref, w_ref, a_ref, b_ref, o_ref, *, out_cols):
    acc = jnp.dot(p_ref[...], w_ref[...], preferred_element_type=jnp.float32)
    y = jnp.maximum(acc * a_ref[...] + b_ref[...], 0.0)
    o_ref[...] = y[:, :out_cols]


# ----------------------------------------------------------------------------
# Parameter binarization (XNOR) + im2col layout glue.
# ----------------------------------------------------------------------------
def _binarize_weight_sign_scale(fp_weight):
    # fp_weight: (O, C, k, k) -> (sign(w_centered_clipped), per-O mean |w|)
    w = fp_weight - jnp.mean(fp_weight, axis=1, keepdims=True)
    w = jnp.clip(w, -1.0, 1.0)
    mean_val = jnp.mean(jnp.abs(w).reshape(w.shape[0], -1), axis=1)   # (O,)
    return jnp.sign(w), mean_val


def _im2col(x, k, stride, padding):
    # x: (N, C, H, W) -> (N*Ho*Wo, C*k*k), flatten order (c, kh, kw)
    N, C, H, W = x.shape
    xp = jnp.pad(x, ((0, 0), (0, 0), (padding, padding), (padding, padding)))
    Ho = (H + 2 * padding - k) // stride + 1
    Wo = (W + 2 * padding - k) // stride + 1
    cols = []
    for kh in range(k):
        for kw in range(k):
            cols.append(xp[:, :, kh:kh + Ho * stride:stride,
                           kw:kw + Wo * stride:stride])
    patches = jnp.stack(cols, axis=0)                  # (k*k, N, C, Ho, Wo)
    patches = patches.reshape(k, k, N, C, Ho, Wo)
    patches = patches.transpose(2, 4, 5, 3, 0, 1)      # (N, Ho, Wo, C, kh, kw)
    return patches.reshape(N * Ho * Wo, C * k * k), Ho, Wo


@functools.partial(
    jax.jit, static_argnames=("kernel_size", "stride", "padding", "tile_m"))
def xnor_conv_bn_relu(x, fp_weight, bias, gamma, beta, *, kernel_size, stride,
                      padding, tile_m=1024):
    """Forward pass of XNORConvBNReLU. x: NCHW float32 -> NCHW float32."""
    del bias  # conv bias cancels exactly against the batch mean in training-
    #           mode BatchNorm (mean includes it), so it never enters compute.
    N, C, H, W = x.shape
    O = fp_weight.shape[0]
    k = kernel_size
    K = C * k * k
    O_pad = _round_up(O, LANE)

    # Weight: pass sign only (exact in bf16), XNOR scale factored out per col.
    w_sign, mean_val = _binarize_weight_sign_scale(fp_weight)   # (O,C,k,k),(O,)
    w_mat = jnp.zeros((K, O_pad), jnp.bfloat16).at[:, :O].set(
        w_sign.reshape(O, K).T.astype(jnp.bfloat16))

    def pad_o(v):
        return jnp.zeros((O_pad,), jnp.float32).at[:O].set(
            v.astype(jnp.float32))

    scale_p = pad_o(mean_val)
    gamma_p = pad_o(gamma)
    beta_p = pad_o(beta)

    # Binarize activations before im2col: sign(0)=0 keeps zero-padding exact,
    # bf16 halves the bytes of the k*k-expanded patch tensor.
    xb = jnp.sign(x).astype(jnp.bfloat16)
    patches, Ho, Wo = _im2col(xb, k, stride, padding)            # (M, K) bf16
    M = N * Ho * Wo

    # Tile size: as big as possible (roofline), capped by an explicit VMEM
    # budget (v7x-safe) and by keeping >= 2 tiles for two-TC "parallel" split.
    vmem_budget = 24 * 1024 * 1024
    weight_bytes = 2 * K * O_pad * 2                 # double-buffered bf16 rhs
    per_row = 2 * K * 2 + 2 * O_pad * 4 + 2 * O * 4  # patches + stats/out bufs
    tm_vmem = max(16, ((vmem_budget - weight_bytes) // per_row) // 16 * 16)
    tm_half = max(16, _round_up((M + 1) // 2, 16))   # >= 2 tiles when M > 16
    tm = max(16, min(_round_up(tile_m, 16), tm_vmem, tm_half))
    n_tiles = -(-M // tm)
    M_pad = n_tiles * tm
    if M_pad > M:
        patches = jnp.pad(patches, ((0, M_pad - M), (0, 0)))  # zero rows -> 0

    cparams = pltpu.CompilerParams(
        dimension_semantics=("parallel",),
        vmem_limit_bytes=32 * 1024 * 1024)

    # ---- Pass 1: per-tile BN partial sums only (no y materialization) ------
    stats = pl.pallas_call(
        _conv_stats_kernel,
        out_shape=jax.ShapeDtypeStruct((n_tiles, 2, O_pad), jnp.float32),
        grid=(n_tiles,),
        in_specs=[pl.BlockSpec((tm, K), lambda i: (i, 0)),
                  pl.BlockSpec((K, O_pad), lambda i: (0, 0))],
        out_specs=pl.BlockSpec((1, 2, O_pad), lambda i: (i, 0, 0)),
        compiler_params=cparams,
    )(patches, w_mat)

    # ---- Tiny per-channel reduction + BN affine fold (in XLA) --------------
    s = jnp.sum(stats[:, 0, :], axis=0)              # (O_pad,) exact int sums
    sq = jnp.sum(stats[:, 1, :], axis=0)
    mean_acc = s / M
    var_acc = jnp.maximum(sq / M - mean_acc * mean_acc, 0.0)  # biased var
    inv = jax.lax.rsqrt(var_acc * (scale_p * scale_p) + BN_EPS)
    a_col = (scale_p * gamma_p * inv).reshape(1, O_pad)
    b_col = (beta_p - scale_p * mean_acc * gamma_p * inv).reshape(1, O_pad)

    # ---- Pass 2: recompute matmul, fused scale + BN + ReLU, single write ---
    out_flat = pl.pallas_call(
        functools.partial(_conv_bn_relu_kernel, out_cols=O),
        out_shape=jax.ShapeDtypeStruct((M_pad, O), jnp.float32),
        grid=(n_tiles,),
        in_specs=[pl.BlockSpec((tm, K), lambda i: (i, 0)),
                  pl.BlockSpec((K, O_pad), lambda i: (0, 0)),
                  pl.BlockSpec((1, O_pad), lambda i: (0, 0)),
                  pl.BlockSpec((1, O_pad), lambda i: (0, 0))],
        out_specs=pl.BlockSpec((tm, O), lambda i: (i, 0)),
        compiler_params=cparams,
    )(patches, w_mat, a_col, b_col)

    # (M, O) -> NCHW (layout only; kept to match the PyTorch module).
    out = out_flat[:M].reshape(N, Ho, Wo, O).transpose(0, 3, 1, 2)
    return out


# ----------------------------------------------------------------------------
# Pure-JAX reference (sanity check)
# ----------------------------------------------------------------------------
def reference(x, fp_weight, bias, gamma, beta, *, kernel_size, stride, padding):
    w_sign, mean_val = _binarize_weight_sign_scale(fp_weight)
    bi_weight = w_sign * mean_val[:, None, None, None]
    xb = jnp.sign(x)
    y = jax.lax.conv_general_dilated(
        xb, bi_weight, window_strides=(stride, stride),
        padding=[(padding, padding), (padding, padding)],
        dimension_numbers=("NCHW", "OIHW", "NCHW"))
    y = y + bias[None, :, None, None]
    mean = jnp.mean(y, axis=(0, 2, 3), keepdims=True)
    var = jnp.mean((y - mean) ** 2, axis=(0, 2, 3), keepdims=True)
    y = (y - mean) * jax.lax.rsqrt(var + BN_EPS)
    y = y * gamma[None, :, None, None] + beta[None, :, None, None]
    return jnp.maximum(y, 0.0)


if __name__ == "__main__":
    # Module config (small): in=4, out=8, k=3, stride=1, padding=1
    N, C_in, H, W = 2, 4, 16, 16
    C_out, k, stride, padding = 8, 3, 1, 1

    key = jax.random.PRNGKey(0)
    kx, kw = jax.random.split(key)
    x = jax.random.normal(kx, (N, C_in, H, W), dtype=jnp.float32)

    # Deterministic parameter init matching the module's __init__ shapes:
    #   full_precision ~ N(0, 0.05), bias = 0, BN gamma = 1, BN beta = 0.
    fp_weight = 0.05 * jax.random.normal(kw, (C_out, C_in, k, k),
                                         dtype=jnp.float32)
    bias = jnp.zeros((C_out,), dtype=jnp.float32)
    gamma = jnp.ones((C_out,), dtype=jnp.float32)
    beta = jnp.zeros((C_out,), dtype=jnp.float32)

    out = xnor_conv_bn_relu(x, fp_weight, bias, gamma, beta,
                            kernel_size=k, stride=stride, padding=padding)
    out = jax.block_until_ready(out)

    ref = reference(x, fp_weight, bias, gamma, beta,
                    kernel_size=k, stride=stride, padding=padding)
    assert out.shape == (N, C_out, H, W)
    assert jnp.allclose(out, ref, atol=2e-3, rtol=2e-3), (
        float(jnp.max(jnp.abs(out - ref))))

    print("KERNEL_OK")
</pallas_src>

<mosaic_0001>
module attributes {stable_mosaic.version = 11 : i64} {
  func.func @_conv_stats_kernel(%arg0: i32, %arg1: memref<256x36xbf16, #tpu.memory_space<vmem>>, %arg2: memref<36x128xbf16, #tpu.memory_space<vmem>>, %arg3: memref<1x2x128xf32, #tpu.memory_space<vmem>>) attributes {dimension_semantics = [#tpu.dimension_semantics<parallel>], iteration_bounds = array<i64: 2>, scalar_prefetch = 0 : i64, scratch_operands = 0 : i64, tpu.core_type = #tpu.core_type<tc>, window_params = [{transform_indices = @transform_0, window_bounds = array<i64: 256, 36>}, {pipeline_mode = #tpu.pipeline_mode<synchronous>, transform_indices = @transform_1, window_bounds = array<i64: 36, 128>}, {transform_indices = @transform_2, window_bounds = array<i64: 1, 2, 128>}]} {
    %c0 = arith.constant 0 : index
    %c0_0 = arith.constant 0 : index
    %0 = vector.load %arg1[%c0, %c0_0] : memref<256x36xbf16, #tpu.memory_space<vmem>>, vector<256x36xbf16>
    %c0_1 = arith.constant 0 : index
    %c0_2 = arith.constant 0 : index
    %1 = vector.load %arg2[%c0_1, %c0_2] : memref<36x128xbf16, #tpu.memory_space<vmem>>, vector<36x128xbf16>
    %cst = arith.constant dense<0.000000e+00> : vector<256x128xf32>
    %2 = tpu.matmul %0, %1, %cst {dimension_numbers = #tpu.dot_dimension_numbers<[1], [0], [0], [1], [0, 0, 1, 1], [], []>} : vector<256x36xbf16>, vector<36x128xbf16>, vector<256x128xf32> -> vector<256x128xf32>
    %cst_3 = arith.constant dense<0.000000e+00> : vector<128xf32>
    %3 = vector.multi_reduction <add>, %2, %cst_3 [0] : vector<256x128xf32> to vector<128xf32>
    %4 = vector.shape_cast %3 : vector<128xf32> to vector<1x128xf32>
    %5 = arith.mulf %2, %2 : vector<256x128xf32>
    %cst_4 = arith.constant dense<0.000000e+00> : vector<128xf32>
    %6 = vector.multi_reduction <add>, %5, %cst_4 [0] : vector<256x128xf32> to vector<128xf32>
    %7 = vector.shape_cast %6 : vector<128xf32> to vector<1x128xf32>
    %8 = tpu.concatenate %4, %7 in 0 : vector<1x128xf32>, vector<1x128xf32> -> vector<2x128xf32>
    %9 = vector.shape_cast %8 : vector<2x128xf32> to vector<1x2x128xf32>
    %c0_5 = arith.constant 0 : index
    %c0_6 = arith.constant 0 : index
    %c0_7 = arith.constant 0 : index
    %10 = vector.load %arg3[%c0_5, %c0_6, %c0_7] : memref<1x2x128xf32, #tpu.memory_space<vmem>>, vector<1x2x128xf32>
    tpu.vector_store %arg3[%c0_5, %c0_6, %c0_7], %9 {strides = array<i32>} : memref<1x2x128xf32, #tpu.memory_space<vmem>>, vector<1x2x128xf32>,
    return
  }
  func.func @transform_0(%arg0: i32) -> (i32, i32) {
    %c0_i32 = arith.constant 0 : i32
    %c0_i32_0 = arith.constant 0 : i32
    return %arg0, %c0_i32 : i32, i32
  }
  func.func @transform_1(%arg0: i32) -> (i32, i32) {
    %c0_i32 = arith.constant 0 : i32
    %c0_i32_0 = arith.constant 0 : i32
    %c0_i32_1 = arith.constant 0 : i32
    return %c0_i32, %c0_i32_0 : i32, i32
  }
  func.func @transform_2(%arg0: i32) -> (i32, i32, i32) {
    %c0_i32 = arith.constant 0 : i32
    %c0_i32_0 = arith.constant 0 : i32
    %c0_i32_1 = arith.constant 0 : i32
    return %arg0, %c0_i32, %c0_i32_0 : i32, i32, i32
  }
}

module attributes {stable_mosaic.version = 11 : i64} {
  func.func @_conv_bn_relu_kernel(%arg0: i32, %arg1: memref<256x36xbf16, #tpu.memory_space<vmem>>, %arg2: memref<36x128xbf16, #tpu.memory_space<vmem>>, %arg3: memref<1x128xf32, #tpu.memory_space<vmem>>, %arg4: memref<1x128xf32, #tpu.memory_space<vmem>>, %arg5: memref<256x8xf32, #tpu.memory_space<vmem>>) attributes {dimension_semantics = [#tpu.dimension_semantics<parallel>], iteration_bounds = array<i64: 2>, scalar_prefetch = 0 : i64, scratch_operands = 0 : i64, tpu.core_type = #tpu.core_type<tc>, window_params = [{transform_indices = @transform_0, window_bounds = array<i64: 256, 36>}, {pipeline_mode = #tpu.pipeline_mode<synchronous>, transform_indices = @transform_1, window_bounds = array<i64: 36, 128>}, {pipeline_mode = #tpu.pipeline_mode<synchronous>, transform_indices = @transform_2, window_bounds = array<i64: 1, 128>}, {pipeline_mode = #tpu.pipeline_mode<synchronous>, transform_indices = @transform_3, window_bounds = array<i64: 1, 128>}, {transform_indices = @transform_4, window_bounds = array<i64: 256, 8>}]} {
    %c0 = arith.constant 0 : index
    %c0_0 = arith.constant 0 : index
    %0 = vector.load %arg1[%c0, %c0_0] : memref<256x36xbf16, #tpu.memory_space<vmem>>, vector<256x36xbf16>
    %c0_1 = arith.constant 0 : index
    %c0_2 = arith.constant 0 : index
    %1 = vector.load %arg2[%c0_1, %c0_2] : memref<36x128xbf16, #tpu.memory_space<vmem>>, vector<36x128xbf16>
    %cst = arith.constant dense<0.000000e+00> : vector<256x128xf32>
    %2 = tpu.matmul %0, %1, %cst {dimension_numbers = #tpu.dot_dimension_numbers<[1], [0], [0], [1], [0, 0, 1, 1], [], []>} : vector<256x36xbf16>, vector<36x128xbf16>, vector<256x128xf32> -> vector<256x128xf32>
    %c0_3 = arith.constant 0 : index
    %c0_4 = arith.constant 0 : index
    %3 = vector.load %arg3[%c0_3, %c0_4] : memref<1x128xf32, #tpu.memory_space<vmem>>, vector<1x128xf32>
    %4 = vector.broadcast %3 : vector<1x128xf32> to vector<256x128xf32>
    %5 = arith.mulf %2, %4 : vector<256x128xf32>
    %c0_5 = arith.constant 0 : index
    %c0_6 = arith.constant 0 : index
    %6 = vector.load %arg4[%c0_5, %c0_6] : memref<1x128xf32, #tpu.memory_space<vmem>>, vector<1x128xf32>
    %7 = vector.broadcast %6 : vector<1x128xf32> to vector<256x128xf32>
    %8 = arith.addf %5, %7 : vector<256x128xf32>
    %cst_7 = arith.constant 0.000000e+00 : f32
    %9 = vector.broadcast %cst_7 : f32 to vector<256x128xf32>
    %10 = arith.maximumf %8, %9 : vector<256x128xf32>
    %11 = vector.extract_strided_slice %10 {offsets = [0, 0], sizes = [256, 8], strides = [1, 1]} : vector<256x128xf32> to vector<256x8xf32>
    %c0_8 = arith.constant 0 : index
    %c0_9 = arith.constant 0 : index
    %12 = vector.load %arg5[%c0_8, %c0_9] : memref<256x8xf32, #tpu.memory_space<vmem>>, vector<256x8xf32>
    tpu.vector_store %arg5[%c0_8, %c0_9], %11 {strides = array<i32>} : memref<256x8xf32, #tpu.memory_space<vmem>>, vector<256x8xf32>,
    return
  }
  func.func @transform_0(%arg0: i32) -> (i32, i32) {
    %c0_i32 = arith.constant 0 : i32
    %c0_i32_0 = arith.constant 0 : i32
    return %arg0, %c0_i32 : i32, i32
  }
  func.func @transform_1(%arg0: i32) -> (i32, i32) {
    %c0_i32 = arith.constant 0 : i32
    %c0_i32_0 = arith.constant 0 : i32
    %c0_i32_1 = arith.constant 0 : i32
    return %c0_i32, %c0_i32_0 : i32, i32
  }
  func.func @transform_2(%arg0: i32) -> (i32, i32) {
    %c0_i32 = arith.constant 0 : i32
    %c0_i32_0 = arith.constant 0 : i32
    %c0_i32_1 = arith.constant 0 : i32
    return %c0_i32, %c0_i32_0 : i32, i32
  }
  func.func @transform_3(%arg0: i32) -> (i32, i32) {
    %c0_i32 = arith.constant 0 : i32
    %c0_i32_0 = arith.constant 0 : i32
    %c0_i32_1 = arith.constant 0 : i32
    return %c0_i32, %c0_i32_0 : i32, i32
  }
  func.func @transform_4(%arg0: i32) -> (i32, i32) {
    %c0_i32 = arith.constant 0 : i32
    %c0_i32_0 = arith.constant 0 : i32
    return %arg0, %c0_i32 : i32, i32
  }
}

</mosaic_0001>

<llo_original>
// kernel: xnor_conv_bn_relu.2
$region0: #{xnor_conv_bn_relu.2}
  #allocation0 [shape = 'u32[]', space=smem, size = 0x4, offset = 0x4, fixed_abs, tag = 'smem constant byte address 0x4 - core index']
  #allocation1 [shape = 'u32[144,128]{1,0:T(1,128)}', space=vmem, size = 0x12000, scoped, tag = 'internal scratch']
  %s0 = inlined_call_operand.vmem [shape: bf16[512,36], index: 0, kind: input, shape index: {}]
  %s1 = inlined_call_operand.vmem [shape: bf16[36,128], index: 1, kind: input, shape index: {}]
  %s2 = inlined_call_operand.vmem [shape: f32[2,2,128], index: 2, kind: output, shape index: {}]
  %s3 = sld [smem:[#allocation0]]
  $region41: #{xnor_conv_bn_relu.2} parent=0
    _
  %s5 = ssub.s32 1, %s3
  %s6 = scalar_select 0, %s5, %s3
  loop: start=0, step=1, limit=4
  $region2: #{xnor_conv_bn_relu.2} parent=0 // loop_pre_header
    _
  $region3: #{xnor_conv_bn_relu.2} parent=0 // loop_header
    %s8 = sphi 0, %s12
    %p9 = scmp.ge.s32.totalorder %s8, 4
    %s18 = sphi 0, %s20
    %s21 = sphi 0, %s18
    %s22 = sphi 0, %s21
    %s38 = sphi 0, %s22
    %s42 = sphi 0, %s42
    %s44 = sphi 0, %s42
    %s45 = sphi 0, %s44
    %s59 = sphi 0, %s45
    %s65 = sphi 0, %s67
    %s68 = sphi 0, %s65
    %s69 = sphi 0, %s68
    %s85 = sphi 0, %s69
  $region4: #{xnor_conv_bn_relu.2} parent=0 // loop_header_branch
    %11 = sbr.rel (%p9) target = $region8
  $region5: #{xnor_conv_bn_relu.2} parent=0 // loop_body
    %s13 = ssub.s32 %s8, 1
    %s14 = ssub.s32 %s8, 2
    %s15 = sadd.s32 %s8, 1
    %s16 = ssub.s32 %s8, %s15
    %p17 = scmp.eq.s32.totalorder %s16, 0
    %s19 = sadd.s32 %s18, 1
    %s20 = scalar_select %p17, %s18, %s19
    %p23 = pneg %p17
    %p24 = scmp.eq.s32.totalorder %s8, 1
    %p25 = por %p23, %p24
    %p26 = scmp.ne.s32.totalorder %s18, %s21
    %p27 = scmp.eq.s32.totalorder %s8, 0
    %p28 = por %p26, %p27
    %p29 = scmp.ne.s32.totalorder %s18, %s21
    %p30 = scmp.eq.s32.totalorder %s13, 1
    %p31 = por %p29, %p30
    %p32 = scmp.ne.s32.totalorder %s21, %s22
    %p33 = scmp.eq.s32.totalorder %s13, 0
    %p34 = por %p32, %p33
    %p35 = scmp.ne.s32.totalorder %s21, %s22
    %p36 = scmp.eq.s32.totalorder %s14, 1
    %p37 = por %p35, %p36
    %p39 = scmp.ne.s32.totalorder %s22, %s38
    %p40 = scmp.eq.s32.totalorder %s14, 0
    %p41 = por %p39, %p40
    %s43 = sadd.s32 %s42, 1
    %p46 = scmp.eq.s32.totalorder %s8, 1
    %p47 = scmp.ne.s32.totalorder %s42, %s44
    %p48 = scmp.eq.s32.totalorder %s8, 0
    %p49 = por %p47, %p48
    %p50 = scmp.ne.s32.totalorder %s42, %s44
    %p51 = scmp.eq.s32.totalorder %s13, 1
    %p52 = por %p50, %p51
    %p53 = scmp.ne.s32.totalorder %s44, %s45
    %p54 = scmp.eq.s32.totalorder %s13, 0
    %p55 = por %p53, %p54
    %p56 = scmp.ne.s32.totalorder %s44, %s45
    %p57 = scmp.eq.s32.totalorder %s14, 1
    %p58 = por %p56, %p57
    %p60 = scmp.ne.s32.totalorder %s45, %s59
    %p61 = scmp.eq.s32.totalorder %s14, 0
    %p62 = por %p60, %p61
    %s63 = ssub.s32 %s8, %s15
    %p64 = scmp.eq.s32.totalorder %s63, 0
    %s66 = sadd.s32 %s65, 1
    %s67 = scalar_select %p64, %s65, %s66
    %p70 = pneg %p64
    %p71 = scmp.eq.s32.totalorder %s8, 1
    %p72 = por %p70, %p71
    %p73 = scmp.ne.s32.totalorder %s65, %s68
    %p74 = scmp.eq.s32.totalorder %s8, 0
    %p75 = por %p73, %p74
    %p76 = scmp.ne.s32.totalorder %s65, %s68
    %p77 = scmp.eq.s32.totalorder %s13, 1
    %p78 = por %p76, %p77
    %p79 = scmp.ne.s32.totalorder %s68, %s69
    %p80 = scmp.eq.s32.totalorder %s13, 0
    %p81 = por %p79, %p80
    %p82 = scmp.ne.s32.totalorder %s68, %s69
    %p83 = scmp.eq.s32.totalorder %s14, 1
    %p84 = por %p82, %p83
    %p86 = scmp.ne.s32.totalorder %s69, %s85
    %p87 = scmp.eq.s32.totalorder %s14, 0
    %p88 = por %p86, %p87
    %p89 = scmp.le.s32.totalorder 1, %s8
    %p90 = scmp.lt.s32.totalorder %s8, 3
    %p91 = pnand %p89, %p90
    %p92 = pneg %p91
    // Predicated region
    $region9: #{xnor_conv_bn_relu.2} parent=5 // pred_check
      _
    $region10: #{xnor_conv_bn_relu.2} parent=5 // pred_check_branch
      %94 = sbr.rel (%p91) target = $region12
    $region11: #{xnor_conv_bn_relu.2} parent=5 // pred_region
      %s95 = ssub.s32 %s8, 1
      // Predicated region
      $region13: #{xnor_conv_bn_relu.2} parent=11 // pred_check
        %p96 = pneg %p55
      $region14: #{xnor_conv_bn_relu.2} parent=11 // pred_check_branch
        %98 = sbr.rel (%p96) target = $region16
      $region15: #{xnor_conv_bn_relu.2} parent=11 // pred_region
        _
      $region16: #{xnor_conv_bn_relu.2} parent=11 // pred_fallthru
        _
    $region12: #{xnor_conv_bn_relu.2} parent=5 // pred_fallthru
      _
    %p99 = scmp.lt.s32.totalorder %s8, 2
    // Predicated region
    $region17: #{xnor_conv_bn_relu.2} parent=5 // pred_check
      %p100 = pneg %p99
    $region18: #{xnor_conv_bn_relu.2} parent=5 // pred_check_branch
      %102 = sbr.rel (%p100) target = $region20
    $region19: #{xnor_conv_bn_relu.2} parent=5 // pred_region
      // Predicated region
      $region21: #{xnor_conv_bn_relu.2} parent=19 // pred_check
        %p103 = pneg %p28
      $region22: #{xnor_conv_bn_relu.2} parent=19 // pred_check_branch
        %105 = sbr.rel (%p103) target = $region24
      $region23: #{xnor_conv_bn_relu.2} parent=19 // pred_region
        %s106 = smul.u32 32, %s8
        %p107 = scmp.lt.s32.totalorder %s106, 63
        %s108 = scalar_select %p107, %s106, 63
        %s109 = smul.addr %s108, 4
        %s110 = scalar_lea.vmem %s0, %s109
        %s111 = smul.u32 32, %s8
      $region24: #{xnor_conv_bn_relu.2} parent=19 // pred_fallthru
        _
    $region20: #{xnor_conv_bn_relu.2} parent=5 // pred_fallthru
      _
    %p112 = scmp.le.s32.totalorder 1, %s8
    %p113 = scmp.lt.s32.totalorder %s8, 3
    %p114 = pnand %p112, %p113
    %p115 = pneg %p114
    // Predicated region
    $region25: #{xnor_conv_bn_relu.2} parent=5 // pred_check
      _
    $region26: #{xnor_conv_bn_relu.2} parent=5 // pred_check_branch
      %117 = sbr.rel (%p114) target = $region28
    $region27: #{xnor_conv_bn_relu.2} parent=5 // pred_region
      %s118 = ssub.s32 %s8, 1
      %s119 = smul.u32 32, %s13
      %p120 = scmp.lt.s32.totalorder %s119, 63
      %s121 = scalar_select %p120, %s119, 63
      %s122 = smul.addr %s121, 4
      %s123 = scalar_lea.vmem %s0, %s122
      %p124 = pneg %p34
      %p125 = pneg %p31
      %p126 = pneg %p55
      %p127 = pneg %p52
      %p128 = pneg %p81
      %p129 = pneg %p78
      %p130 = scmp.lt.s32.totalorder %s13, 1
      %s131 = scalar_select %p130, %s13, 1
      %s132 = smul.addr %s131, 2
      %s133 = scalar_lea.vmem %s2, %s132
      %s134 = smul.u32 32, %s13
      %p135 = scmp.lt.s32.totalorder %s134, 63
      %s136 = scalar_select %p135, %s134, 63
      %s137 = smul.addr %s136, 4
      %s138 = scalar_lea.vmem %s0, %s137
      %s139 = smul.u32 32, %s13
      %p140 = scmp.lt.s32.totalorder %s13, 1
      %s141 = scalar_select %p140, %s13, 1
      %s142 = smul.addr %s141, 2
      %s143 = scalar_lea.vmem %s2, %s142
      %v145 = vld [vmem:[%s138] sm:$0xf]
      %v146 = vld [vmem:[%s138 + $0x4] sm:$0xf]
      %v147 = vld [vmem:[%s138 + $0x8] sm:$0xf]
      %v148 = vld [vmem:[%s138 + $0xc] sm:$0xf]
      %v149 = vld [vmem:[%s138 + $0x10] sm:$0xf]
      %v150 = vld [vmem:[%s138 + $0x14] sm:$0xf]
      %v151 = vld [vmem:[%s138 + $0x18] sm:$0xf]
      %v152 = vld [vmem:[%s138 + $0x1c] sm:$0xf]
      %v153 = vld [vmem:[%s138 + $0x20] sm:$0xf]
      %v154 = vld [vmem:[%s138 + $0x24] sm:$0xf]
      %v155 = vld [vmem:[%s138 + $0x28] sm:$0xf]
      %v156 = vld [vmem:[%s138 + $0x2c] sm:$0xf]
      %v157 = vld [vmem:[%s138 + $0x30] sm:$0xf]
      %v158 = vld [vmem:[%s138 + $0x34] sm:$0xf]
      %v159 = vld [vmem:[%s138 + $0x38] sm:$0xf]
      %v160 = vld [vmem:[%s138 + $0x3c] sm:$0xf]
      %v161 = vld [vmem:[%s138 + $0x40] sm:$0xf]
      %v162 = vld [vmem:[%s138 + $0x44] sm:$0xf]
      %v163 = vld [vmem:[%s138 + $0x48] sm:$0xf]
      %v164 = vld [vmem:[%s138 + $0x4c] sm:$0xf]
      %v165 = vld [vmem:[%s138 + $0x50] sm:$0xf]
      %v166 = vld [vmem:[%s138 + $0x54] sm:$0xf]
      %v167 = vld [vmem:[%s138 + $0x58] sm:$0xf]
      %v168 = vld [vmem:[%s138 + $0x5c] sm:$0xf]
      %v169 = vld [vmem:[%s138 + $0x60] sm:$0xf]
      %v170 = vld [vmem:[%s138 + $0x64] sm:$0xf]
      %v171 = vld [vmem:[%s138 + $0x68] sm:$0xf]
      %v172 = vld [vmem:[%s138 + $0x6c] sm:$0xf]
      %v173 = vld [vmem:[%s138 + $0x70] sm:$0xf]
      %v174 = vld [vmem:[%s138 + $0x74] sm:$0xf]
      %v175 = vld [vmem:[%s138 + $0x78] sm:$0xf]
      %v176 = vld [vmem:[%s138 + $0x7c] sm:$0xf]
      %v177 = vld [vmem:[%s1] sm:$0xf]
      %v178 = vld [vmem:[%s1 + $0x4] sm:$0xf]
      %v179 = vld [vmem:[%s1 + $0x8] sm:$0xf]
      %v180 = vld [vmem:[%s1 + $0xc] sm:$0xf]
      %v181 = vld [vmem:[%s1 + $0x10] sm:$0x3]
      %v214 = vunpack.c.l.b16 %v145
      %v215 = vunpack.c.l.b16 %v146
      %v216 = vunpack.c.l.b16 %v147
      %v217 = vunpack.c.l.b16 %v148
      %v218 = vunpack.c.l.b16 %v149
      %v219 = vunpack.c.l.b16 %v150
      %v220 = vunpack.c.l.b16 %v151
      %v221 = vunpack.c.l.b16 %v152
      %v222 = vunpack.c.l.b16 %v153
      %v223 = vunpack.c.l.b16 %v154
      %v224 = vunpack.c.l.b16 %v155
      %v225 = vunpack.c.l.b16 %v156
      %v226 = vunpack.c.l.b16 %v157
      %v227 = vunpack.c.l.b16 %v158
      %v228 = vunpack.c.l.b16 %v159
      %v229 = vunpack.c.l.b16 %v160
      %v230 = vunpack.c.l.b16 %v161
      %v231 = vunpack.c.l.b16 %v162
      %v232 = vunpack.c.l.b16 %v163
      %v233 = vunpack.c.l.b16 %v164
      %v234 = vunpack.c.l.b16 %v165
      %v235 = vunpack.c.l.b16 %v166
      %v236 = vunpack.c.l.b16 %v167
      %v237 = vunpack.c.l.b16 %v168
      %v238 = vunpack.c.l.b16 %v169
      %v239 = vunpack.c.l.b16 %v170
      %v240 = vunpack.c.l.b16 %v171
      %v241 = vunpack.c.l.b16 %v172
      %v242 = vunpack.c.l.b16 %v173
      %v243 = vunpack.c.l.b16 %v174
      %v244 = vunpack.c.l.b16 %v175
      %v245 = vunpack.c.l.b16 %v176
      %v246 = vpack.c.b16 %v215, %v214
      %v247 = vpack.c.b16 %v217, %v216
      %v248 = vpack.c.b16 %v219, %v218
      %v249 = vpack.c.b16 %v221, %v220
      %v250 = vpack.c.b16 %v223, %v222
      %v251 = vpack.c.b16 %v225, %v224
      %v252 = vpack.c.b16 %v227, %v226
      %v253 = vpack.c.b16 %v229, %v228
      %v254 = vpack.c.b16 %v231, %v230
      %v255 = vpack.c.b16 %v233, %v232
      %v256 = vpack.c.b16 %v235, %v234
      %v257 = vpack.c.b16 %v237, %v236
      %v258 = vpack.c.b16 %v239, %v238
      %v259 = vpack.c.b16 %v241, %v240
      %v260 = vpack.c.b16 %v243, %v242
      %v261 = vpack.c.b16 %v245, %v244
      %v267 = vunpack.c.l.b16 %v177
      %v268 = vunpack.c.l.b16 %v178
      %v269 = vunpack.c.l.b16 %v179
      %v270 = vunpack.c.l.b16 %v180
      %v271 = vunpack.c.l.b16 %v181
      %v272 = vpack.c.b16 %v268, %v267
      %v273 = vpack.c.b16 %v270, %v269
      %v274 = vpack.c.b16 %v271, %v271
      %vm277 = vcmask 293888
      %v279 = vsel %vm277, %v246, 0
      %v282 = vsel %vm277, %v247, 0
      %v285 = vsel %vm277, %v248, 0
      %v288 = vsel %vm277, %v249, 0
      %v291 = vsel %vm277, %v250, 0
      %v294 = vsel %vm277, %v251, 0
      %v297 = vsel %vm277, %v252, 0
      %v300 = vsel %vm277, %v253, 0
      %v303 = vsel %vm277, %v254, 0
      %v306 = vsel %vm277, %v255, 0
      %v309 = vsel %vm277, %v256, 0
      %v312 = vsel %vm277, %v257, 0
      %v315 = vsel %vm277, %v258, 0
      %v318 = vsel %vm277, %v259, 0
      %v321 = vsel %vm277, %v260, 0
      %v324 = vsel %vm277, %v261, 0
      %vm326 = vcmask 1041408
      %v328 = vsel %vm326, %v274, 0
      %330 = vmatprep.subr.bf16.mxu0 0
      %331 = vmatpush1.bf16.msra.mxu0 %v272
      %332 = vmatprep.subr.bf16.mxu0 0
      %333 = vmatpush1.bf16.msra.mxu0 %v273
      %334 = vmatprep.subr.bf16.mxu0 0
      %335 = vmatpush1.bf16.msra.mxu0 %v328
      %336 = vmatprep.subr.bf16.mxu0 0
      %337 = vmatpush1.bf16.msra.mxu0 0
      %338 = vmatprep.subr.bf16.mxu0 0
      %339 = vmatpush1.bf16.msra.mxu0 0
      %340 = vmatprep.subr.bf16.mxu0 0
      %341 = vmatpush1.bf16.msra.mxu0 0
      %342 = vmatprep.subr.bf16.mxu0 0
      %343 = vmatpush1.bf16.msra.mxu0 0
      %344 = vmatprep.subr.bf16.mxu0 0
      %345 = vmatpush1.bf16.msra.mxu0 0
      %346 = vmatprep.subr.bf16.mxu0 0
      %347 = vmatpush1.bf16.msra.mxu0 0
      %348 = vmatprep.subr.bf16.mxu0 0
      %349 = vmatpush1.bf16.msra.mxu0 0
      %350 = vmatprep.subr.bf16.mxu0 0
      %351 = vmatpush1.bf16.msra.mxu0 0
      %352 = vmatprep.subr.bf16.mxu0 0
      %353 = vmatpush1.bf16.msra.mxu0 0
      %354 = vmatprep.subr.bf16.mxu0 0
      %355 = vmatpush1.bf16.msra.mxu0 0
      %356 = vmatprep.subr.bf16.mxu0 0
      %357 = vmatpush1.bf16.msra.mxu0 0
      %358 = vmatprep.subr.bf16.mxu0 0
      %359 = vmatpush1.bf16.msra.mxu0 0
      %360 = vmatprep.subr.bf16.mxu0 0
      %361 = vmatpush1.bf16.msra.mxu0 0
      %362 = vmatprep.mubr.bf16.mxu0 0
      %363 = vmatmul.mubr.bf16.gmra.mrb[0].mxu0 %v279
      %v364 = vpop.f32.mrb[0].mxu0
      %v365 = vadd.f32 0.0, %v364
      %v366 = vpop.f32.mrb[0].mxu0
      %v367 = vpop.f32.mrb[0].mxu0
      %v368 = vadd.f32 0.0, %v367
      %v369 = vpop.f32.mrb[0].mxu0
      %370 = vmatprep.mubr.bf16.mxu0 0
      %371 = vmatmul.mubr.bf16.gmra.mrb[0].mxu0 %v282
      %v372 = vpop.f32.mrb[0].mxu0
      %v373 = vadd.f32 0.0, %v372
      %v374 = vpop.f32.mrb[0].mxu0
      %v375 = vpop.f32.mrb[0].mxu0
      %v376 = vadd.f32 0.0, %v375
      %v377 = vpop.f32.mrb[0].mxu0
      %378 = vmatprep.mubr.bf16.mxu0 0
      %379 = vmatmul.mubr.bf16.gmra.mrb[0].mxu0 %v285
      %v380 = vpop.f32.mrb[0].mxu0
      %v381 = vadd.f32 0.0, %v380
      %v382 = vpop.f32.mrb[0].mxu0
      %v383 = vpop.f32.mrb[0].mxu0
      %v384 = vadd.f32 0.0, %v383
      %v385 = vpop.f32.mrb[0].mxu0
      %386 = vmatprep.mubr.bf16.mxu0 0
      %387 = vmatmul.mubr.bf16.gmra.mrb[0].mxu0 %v288
      %v388 = vpop.f32.mrb[0].mxu0
      %v389 = vadd.f32 0.0, %v388
      %v390 = vpop.f32.mrb[0].mxu0
      %v391 = vpop.f32.mrb[0].mxu0
      %v392 = vadd.f32 0.0, %v391
      %v393 = vpop.f32.mrb[0].mxu0
      %394 = vmatprep.mubr.bf16.mxu0 0
      %395 = vmatmul.mubr.bf16.gmra.mrb[0].mxu0 %v291
      %v396 = vpop.f32.mrb[0].mxu0
      %v397 = vadd.f32 0.0, %v396
      %v398 = vpop.f32.mrb[0].mxu0
      %v399 = vpop.f32.mrb[0].mxu0
      %v400 = vadd.f32 0.0, %v399
      %v401 = vpop.f32.mrb[0].mxu0
      %402 = vmatprep.mubr.bf16.mxu0 0
      %403 = vmatmul.mubr.bf16.gmra.mrb[0].mxu0 %v294
      %v404 = vpop.f32.mrb[0].mxu0
      %v405 = vadd.f32 0.0, %v404
      %v406 = vpop.f32.mrb[0].mxu0
      %v407 = vpop.f32.mrb[0].mxu0
      %v408 = vadd.f32 0.0, %v407
      %v409 = vpop.f32.mrb[0].mxu0
      %410 = vmatprep.mubr.bf16.mxu0 0
      %411 = vmatmul.mubr.bf16.gmra.mrb[0].mxu0 %v297
      %v412 = vpop.f32.mrb[0].mxu0
      %v413 = vadd.f32 0.0, %v412
      %v414 = vpop.f32.mrb[0].mxu0
      %v415 = vpop.f32.mrb[0].mxu0
      %v416 = vadd.f32 0.0, %v415
      %v417 = vpop.f32.mrb[0].mxu0
      %418 = vmatprep.mubr.bf16.mxu0 0
      %419 = vmatmul.mubr.bf16.gmra.mrb[0].mxu0 %v300
      %v420 = vpop.f32.mrb[0].mxu0
      %v421 = vadd.f32 0.0, %v420
      %v422 = vpop.f32.mrb[0].mxu0
      %v423 = vpop.f32.mrb[0].mxu0
      %v424 = vadd.f32 0.0, %v423
      %v425 = vpop.f32.mrb[0].mxu0
      %426 = vmatprep.mubr.bf16.mxu0 0
      %427 = vmatmul.mubr.bf16.gmra.mrb[0].mxu0 %v303
      %v428 = vpop.f32.mrb[0].mxu0
      %v429 = vadd.f32 0.0, %v428
      %v430 = vpop.f32.mrb[0].mxu0
      %v431 = vpop.f32.mrb[0].mxu0
      %v432 = vadd.f32 0.0, %v431
      %v433 = vpop.f32.mrb[0].mxu0
      %434 = vmatprep.mubr.bf16.mxu0 0
      %435 = vmatmul.mubr.bf16.gmra.mrb[0].mxu0 %v306
      %v436 = vpop.f32.mrb[0].mxu0
      %v437 = vadd.f32 0.0, %v436
      %v438 = vpop.f32.mrb[0].mxu0
      %v439 = vpop.f32.mrb[0].mxu0
      %v440 = vadd.f32 0.0, %v439
      %v441 = vpop.f32.mrb[0].mxu0
      %442 = vmatprep.mubr.bf16.mxu0 0
      %443 = vmatmul.mubr.bf16.gmra.mrb[0].mxu0 %v309
      %v444 = vpop.f32.mrb[0].mxu0
      %v445 = vadd.f32 0.0, %v444
      %v446 = vpop.f32.mrb[0].mxu0
      %v447 = vpop.f32.mrb[0].mxu0
      %v448 = vadd.f32 0.0, %v447
      %v449 = vpop.f32.mrb[0].mxu0
      %450 = vmatprep.mubr.bf16.mxu0 0
      %451 = vmatmul.mubr.bf16.gmra.mrb[0].mxu0 %v312
      %v452 = vpop.f32.mrb[0].mxu0
      %v453 = vadd.f32 0.0, %v452
      %v454 = vpop.f32.mrb[0].mxu0
      %v455 = vpop.f32.mrb[0].mxu0
      %v456 = vadd.f32 0.0, %v455
      %v457 = vpop.f32.mrb[0].mxu0
      %458 = vmatprep.mubr.bf16.mxu0 0
      %459 = vmatmul.mubr.bf16.gmra.mrb[0].mxu0 %v315
      %v460 = vpop.f32.mrb[0].mxu0
      %v461 = vadd.f32 0.0, %v460
      %v462 = vpop.f32.mrb[0].mxu0
      %v463 = vpop.f32.mrb[0].mxu0
      %v464 = vadd.f32 0.0, %v463
      %v465 = vpop.f32.mrb[0].mxu0
      %466 = vmatprep.mubr.bf16.mxu0 0
      %467 = vmatmul.mubr.bf16.gmra.mrb[0].mxu0 %v318
      %v468 = vpop.f32.mrb[0].mxu0
      %v469 = vadd.f32 0.0, %v468
      %v470 = vpop.f32.mrb[0].mxu0
      %v471 = vpop.f32.mrb[0].mxu0
      %v472 = vadd.f32 0.0, %v471
      %v473 = vpop.f32.mrb[0].mxu0
      %474 = vmatprep.mubr.bf16.mxu0 0
      %475 = vmatmul.mubr.bf16.gmra.mrb[0].mxu0 %v321
      %v476 = vpop.f32.mrb[0].mxu0
      %v477 = vadd.f32 0.0, %v476
      %v478 = vpop.f32.mrb[0].mxu0
      %v479 = vpop.f32.mrb[0].mxu0
      %v480 = vadd.f32 0.0, %v479
      %v481 = vpop.f32.mrb[0].mxu0
      %482 = vmatprep.mubr.bf16.mxu0 0
      %483 = vmatmul.mubr.bf16.gmra.mrb[0].mxu0 %v324
      %v484 = vpop.f32.mrb[0].mxu0
      %v485 = vadd.f32 0.0, %v484
      %v486 = vpop.f32.mrb[0].mxu0
      %v487 = vpop.f32.mrb[0].mxu0
      %v488 = vadd.f32 0.0, %v487
      %v489 = vpop.f32.mrb[0].mxu0
      %490 = vdwg.mxu0
      %v491 = vadd.f32 %v365, %v368
      %v492 = vadd.f32 %v491, %v373
      %v493 = vadd.f32 %v492, %v376
      %v494 = vadd.f32 %v493, %v381
      %v495 = vadd.f32 %v494, %v384
      %v496 = vadd.f32 %v495, %v389
      %v497 = vadd.f32 %v496, %v392
      %v498 = vadd.f32 %v497, %v397
      %v499 = vadd.f32 %v498, %v400
      %v500 = vadd.f32 %v499, %v405
      %v501 = vadd.f32 %v500, %v408
      %v502 = vadd.f32 %v501, %v413
      %v503 = vadd.f32 %v502, %v416
      %v504 = vadd.f32 %v503, %v421
      %v505 = vadd.f32 %v504, %v424
      %v506 = vadd.f32 %v505, %v429
      %v507 = vadd.f32 %v506, %v432
      %v508 = vadd.f32 %v507, %v437
      %v509 = vadd.f32 %v508, %v440
      %v510 = vadd.f32 %v509, %v445
      %v511 = vadd.f32 %v510, %v448
      %v512 = vadd.f32 %v511, %v453
      %v513 = vadd.f32 %v512, %v456
      %v514 = vadd.f32 %v513, %v461
      %v515 = vadd.f32 %v514, %v464
      %v516 = vadd.f32 %v515, %v469
      %v517 = vadd.f32 %v516, %v472
      %v518 = vadd.f32 %v517, %v477
      %v519 = vadd.f32 %v518, %v480
      %v520 = vadd.f32 %v519, %v485
      %v521 = vadd.f32 %v520, %v488
      %v522 = vrot.slane %v521, 4
      %v523 = vadd.f32 %v521, %v522
      %v524 = vrot.slane %v523, 2
      %v525 = vadd.f32 %v523, %v524
      %v526 = vrot.slane %v525, 1
      %v527 = vadd.f32 %v525, %v526
      %v528 = vmul.f32 %v365, %v365
      %v529 = vmul.f32 %v368, %v368
      %v530 = vmul.f32 %v373, %v373
      %v531 = vmul.f32 %v376, %v376
      %v532 = vmul.f32 %v381, %v381
      %v533 = vmul.f32 %v384, %v384
      %v534 = vmul.f32 %v389, %v389
      %v535 = vmul.f32 %v392, %v392
      %v536 = vmul.f32 %v397, %v397
      %v537 = vmul.f32 %v400, %v400
      %v538 = vmul.f32 %v405, %v405
      %v539 = vmul.f32 %v408, %v408
      %v540 = vmul.f32 %v413, %v413
      %v541 = vmul.f32 %v416, %v416
      %v542 = vmul.f32 %v421, %v421
      %v543 = vmul.f32 %v424, %v424
      %v544 = vmul.f32 %v429, %v429
      %v545 = vmul.f32 %v432, %v432
      %v546 = vmul.f32 %v437, %v437
      %v547 = vmul.f32 %v440, %v440
      %v548 = vmul.f32 %v445, %v445
      %v549 = vmul.f32 %v448, %v448
      %v550 = vmul.f32 %v453, %v453
      %v551 = vmul.f32 %v456, %v456
      %v552 = vmul.f32 %v461, %v461
      %v553 = vmul.f32 %v464, %v464
      %v554 = vmul.f32 %v469, %v469
      %v555 = vmul.f32 %v472, %v472
      %v556 = vmul.f32 %v477, %v477
      %v557 = vmul.f32 %v480, %v480
      %v558 = vmul.f32 %v485, %v485
      %v559 = vmul.f32 %v488, %v488
      %v560 = vadd.f32 %v528, %v529
      %v561 = vadd.f32 %v560, %v530
      %v562 = vadd.f32 %v561, %v531
      %v563 = vadd.f32 %v562, %v532
      %v564 = vadd.f32 %v563, %v533
      %v565 = vadd.f32 %v564, %v534
      %v566 = vadd.f32 %v565, %v535
      %v567 = vadd.f32 %v566, %v536
      %v568 = vadd.f32 %v567, %v537
      %v569 = vadd.f32 %v568, %v538
      %v570 = vadd.f32 %v569, %v539
      %v571 = vadd.f32 %v570, %v540
      %v572 = vadd.f32 %v571, %v541
      %v573 = vadd.f32 %v572, %v542
      %v574 = vadd.f32 %v573, %v543
      %v575 = vadd.f32 %v574, %v544
      %v576 = vadd.f32 %v575, %v545
      %v577 = vadd.f32 %v576, %v546
      %v578 = vadd.f32 %v577, %v547
      %v579 = vadd.f32 %v578, %v548
      %v580 = vadd.f32 %v579, %v549
      %v581 = vadd.f32 %v580, %v550
      %v582 = vadd.f32 %v581, %v551
      %v583 = vadd.f32 %v582, %v552
      %v584 = vadd.f32 %v583, %v553
      %v585 = vadd.f32 %v584, %v554
      %v586 = vadd.f32 %v585, %v555
      %v587 = vadd.f32 %v586, %v556
      %v588 = vadd.f32 %v587, %v557
      %v589 = vadd.f32 %v588, %v558
      %v590 = vadd.f32 %v589, %v559
      %v591 = vrot.slane %v590, 4
      %v592 = vadd.f32 %v590, %v591
      %v593 = vrot.slane %v592, 2
      %v594 = vadd.f32 %v592, %v593
      %v595 = vrot.slane %v594, 1
      %v596 = vadd.f32 %v594, %v595
      %vm597 = vcmask 1040384
      %v598 = vsel %vm597, %v527, %v596
      %599 = vst [vmem:[%s143] sm:$0x3] %v598
      %p600 = scmp.lt.s32.totalorder %s13, 1
      %s601 = scalar_select %p600, %s13, 1
      %s602 = smul.addr %s601, 2
      %s603 = scalar_lea.vmem %s2, %s602
      // Predicated region
      $region29: #{xnor_conv_bn_relu.2} parent=27 // pred_check
        %p604 = pneg %p78
      $region30: #{xnor_conv_bn_relu.2} parent=27 // pred_check_branch
        %606 = sbr.rel (%p604) target = $region32
      $region31: #{xnor_conv_bn_relu.2} parent=27 // pred_region
        _
      $region32: #{xnor_conv_bn_relu.2} parent=27 // pred_fallthru
        _
    $region28: #{xnor_conv_bn_relu.2} parent=5 // pred_fallthru
      _
    %p607 = scmp.le.s32.totalorder 2, %s8
    // Predicated region
    $region33: #{xnor_conv_bn_relu.2} parent=5 // pred_check
      %p608 = pneg %p607
    $region34: #{xnor_conv_bn_relu.2} parent=5 // pred_check_branch
      %610 = sbr.rel (%p608) target = $region36
    $region35: #{xnor_conv_bn_relu.2} parent=5 // pred_region
      %s611 = ssub.s32 %s8, 2
      // Predicated region
      $region37: #{xnor_conv_bn_relu.2} parent=35 // pred_check
        %p612 = pneg %p84
      $region38: #{xnor_conv_bn_relu.2} parent=35 // pred_check_branch
        %614 = sbr.rel (%p612) target = $region40
      $region39: #{xnor_conv_bn_relu.2} parent=35 // pred_region
        %p615 = scmp.lt.s32.totalorder %s14, 1
        %s616 = scalar_select %p615, %s14, 1
        %s617 = smul.addr %s616, 2
        %s618 = scalar_lea.vmem %s2, %s617
      $region40: #{xnor_conv_bn_relu.2} parent=35 // pred_fallthru
        _
    $region36: #{xnor_conv_bn_relu.2} parent=5 // pred_fallthru
      _
  $region6: #{xnor_conv_bn_relu.2} parent=0 // loop_footer
    %s12 = sadd.s32 1, %s8
  $region7: #{xnor_conv_bn_relu.2} parent=0 // loop_footer_branch
    %7 = sbr.rel target = $region3
  $region8: #{xnor_conv_bn_relu.2} parent=0 // loop_exit
    _

// kernel: xnor_conv_bn_relu.3
$region0: #{xnor_conv_bn_relu.3}
  #allocation0 [shape = 'u32[]', space=smem, size = 0x4, offset = 0x4, fixed_abs, tag = 'smem constant byte address 0x4 - core index']
  #allocation1 [shape = 'u32[144,128]{1,0:T(1,128)}', space=vmem, size = 0x12000, scoped, tag = 'internal scratch']
  %s0 = inlined_call_operand.vmem [shape: bf16[512,36], index: 0, kind: input, shape index: {}]
  %s1 = inlined_call_operand.vmem [shape: bf16[36,128], index: 1, kind: input, shape index: {}]
  %s2 = inlined_call_operand.vmem [shape: f32[1,128], index: 2, kind: input, shape index: {}]
  %s3 = inlined_call_operand.vmem [shape: f32[1,128], index: 3, kind: input, shape index: {}]
  %s4 = inlined_call_operand.vmem [shape: f32[512,8], index: 4, kind: output, shape index: {}]
  %s5 = sld [smem:[#allocation0]]
  $region49: #{xnor_conv_bn_relu.3} parent=0
    _
  %s7 = ssub.s32 1, %s5
  %s8 = scalar_select 0, %s7, %s5
  loop: start=0, step=1, limit=4
  $region2: #{xnor_conv_bn_relu.3} parent=0 // loop_pre_header
    _
  $region3: #{xnor_conv_bn_relu.3} parent=0 // loop_header
    %s10 = sphi 0, %s14
    %p11 = scmp.ge.s32.totalorder %s10, 4
    %s20 = sphi 0, %s22
    %s23 = sphi 0, %s20
    %s24 = sphi 0, %s23
    %s40 = sphi 0, %s24
    %s44 = sphi 0, %s44
    %s46 = sphi 0, %s44
    %s47 = sphi 0, %s46
    %s61 = sphi 0, %s47
    %s65 = sphi 0, %s65
    %s67 = sphi 0, %s65
    %s68 = sphi 0, %s67
    %s82 = sphi 0, %s68
    %s86 = sphi 0, %s86
    %s88 = sphi 0, %s86
    %s89 = sphi 0, %s88
    %s103 = sphi 0, %s89
    %s109 = sphi 0, %s111
    %s112 = sphi 0, %s109
    %s113 = sphi 0, %s112
    %s129 = sphi 0, %s113
  $region4: #{xnor_conv_bn_relu.3} parent=0 // loop_header_branch
    %13 = sbr.rel (%p11) target = $region8
  $region5: #{xnor_conv_bn_relu.3} parent=0 // loop_body
    %s15 = ssub.s32 %s10, 1
    %s16 = ssub.s32 %s10, 2
    %s17 = sadd.s32 %s10, 1
    %s18 = ssub.s32 %s10, %s17
    %p19 = scmp.eq.s32.totalorder %s18, 0
    %s21 = sadd.s32 %s20, 1
    %s22 = scalar_select %p19, %s20, %s21
    %p25 = pneg %p19
    %p26 = scmp.eq.s32.totalorder %s10, 1
    %p27 = por %p25, %p26
    %p28 = scmp.ne.s32.totalorder %s20, %s23
    %p29 = scmp.eq.s32.totalorder %s10, 0
    %p30 = por %p28, %p29
    %p31 = scmp.ne.s32.totalorder %s20, %s23
    %p32 = scmp.eq.s32.totalorder %s15, 1
    %p33 = por %p31, %p32
    %p34 = scmp.ne.s32.totalorder %s23, %s24
    %p35 = scmp.eq.s32.totalorder %s15, 0
    %p36 = por %p34, %p35
    %p37 = scmp.ne.s32.totalorder %s23, %s24
    %p38 = scmp.eq.s32.totalorder %s16, 1
    %p39 = por %p37, %p38
    %p41 = scmp.ne.s32.totalorder %s24, %s40
    %p42 = scmp.eq.s32.totalorder %s16, 0
    %p43 = por %p41, %p42
    %s45 = sadd.s32 %s44, 1
    %p48 = scmp.eq.s32.totalorder %s10, 1
    %p49 = scmp.ne.s32.totalorder %s44, %s46
    %p50 = scmp.eq.s32.totalorder %s10, 0
    %p51 = por %p49, %p50
    %p52 = scmp.ne.s32.totalorder %s44, %s46
    %p53 = scmp.eq.s32.totalorder %s15, 1
    %p54 = por %p52, %p53
    %p55 = scmp.ne.s32.totalorder %s46, %s47
    %p56 = scmp.eq.s32.totalorder %s15, 0
    %p57 = por %p55, %p56
    %p58 = scmp.ne.s32.totalorder %s46, %s47
    %p59 = scmp.eq.s32.totalorder %s16, 1
    %p60 = por %p58, %p59
    %p62 = scmp.ne.s32.totalorder %s47, %s61
    %p63 = scmp.eq.s32.totalorder %s16, 0
    %p64 = por %p62, %p63
    %s66 = sadd.s32 %s65, 1
    %p69 = scmp.eq.s32.totalorder %s10, 1
    %p70 = scmp.ne.s32.totalorder %s65, %s67
    %p71 = scmp.eq.s32.totalorder %s10, 0
    %p72 = por %p70, %p71
    %p73 = scmp.ne.s32.totalorder %s65, %s67
    %p74 = scmp.eq.s32.totalorder %s15, 1
    %p75 = por %p73, %p74
    %p76 = scmp.ne.s32.totalorder %s67, %s68
    %p77 = scmp.eq.s32.totalorder %s15, 0
    %p78 = por %p76, %p77
    %p79 = scmp.ne.s32.totalorder %s67, %s68
    %p80 = scmp.eq.s32.totalorder %s16, 1
    %p81 = por %p79, %p80
    %p83 = scmp.ne.s32.totalorder %s68, %s82
    %p84 = scmp.eq.s32.totalorder %s16, 0
    %p85 = por %p83, %p84
    %s87 = sadd.s32 %s86, 1
    %p90 = scmp.eq.s32.totalorder %s10, 1
    %p91 = scmp.ne.s32.totalorder %s86, %s88
    %p92 = scmp.eq.s32.totalorder %s10, 0
    %p93 = por %p91, %p92
    %p94 = scmp.ne.s32.totalorder %s86, %s88
    %p95 = scmp.eq.s32.totalorder %s15, 1
    %p96 = por %p94, %p95
    %p97 = scmp.ne.s32.totalorder %s88, %s89
    %p98 = scmp.eq.s32.totalorder %s15, 0
    %p99 = por %p97, %p98
    %p100 = scmp.ne.s32.totalorder %s88, %s89
    %p101 = scmp.eq.s32.totalorder %s16, 1
    %p102 = por %p100, %p101
    %p104 = scmp.ne.s32.totalorder %s89, %s103
    %p105 = scmp.eq.s32.totalorder %s16, 0
    %p106 = por %p104, %p105
    %s107 = ssub.s32 %s10, %s17
    %p108 = scmp.eq.s32.totalorder %s107, 0
    %s110 = sadd.s32 %s109, 1
    %s111 = scalar_select %p108, %s109, %s110
    %p114 = pneg %p108
    %p115 = scmp.eq.s32.totalorder %s10, 1
    %p116 = por %p114, %p115
    %p117 = scmp.ne.s32.totalorder %s109, %s112
    %p118 = scmp.eq.s32.totalorder %s10, 0
    %p119 = por %p117, %p118
    %p120 = scmp.ne.s32.totalorder %s109, %s112
    %p121 = scmp.eq.s32.totalorder %s15, 1
    %p122 = por %p120, %p121
    %p123 = scmp.ne.s32.totalorder %s112, %s113
    %p124 = scmp.eq.s32.totalorder %s15, 0
    %p125 = por %p123, %p124
    %p126 = scmp.ne.s32.totalorder %s112, %s113
    %p127 = scmp.eq.s32.totalorder %s16, 1
    %p128 = por %p126, %p127
    %p130 = scmp.ne.s32.totalorder %s113, %s129
    %p131 = scmp.eq.s32.totalorder %s16, 0
    %p132 = por %p130, %p131
    %p133 = scmp.le.s32.totalorder 1, %s10
    %p134 = scmp.lt.s32.totalorder %s10, 3
    %p135 = pnand %p133, %p134
    %p136 = pneg %p135
    // Predicated region
    $region9: #{xnor_conv_bn_relu.3} parent=5 // pred_check
      _
    $region10: #{xnor_conv_bn_relu.3} parent=5 // pred_check_branch
      %138 = sbr.rel (%p135) target = $region12
    $region11: #{xnor_conv_bn_relu.3} parent=5 // pred_region
      %s139 = ssub.s32 %s10, 1
      // Predicated region
      $region13: #{xnor_conv_bn_relu.3} parent=11 // pred_check
        %p140 = pneg %p57
      $region14: #{xnor_conv_bn_relu.3} parent=11 // pred_check_branch
        %142 = sbr.rel (%p140) target = $region16
      $region15: #{xnor_conv_bn_relu.3} parent=11 // pred_region
        _
      $region16: #{xnor_conv_bn_relu.3} parent=11 // pred_fallthru
        _
      // Predicated region
      $region17: #{xnor_conv_bn_relu.3} parent=11 // pred_check
        %p143 = pneg %p78
      $region18: #{xnor_conv_bn_relu.3} parent=11 // pred_check_branch
        %145 = sbr.rel (%p143) target = $region20
      $region19: #{xnor_conv_bn_relu.3} parent=11 // pred_region
        _
      $region20: #{xnor_conv_bn_relu.3} parent=11 // pred_fallthru
        _
      // Predicated region
      $region21: #{xnor_conv_bn_relu.3} parent=11 // pred_check
        %p146 = pneg %p99
      $region22: #{xnor_conv_bn_relu.3} parent=11 // pred_check_branch
        %148 = sbr.rel (%p146) target = $region24
      $region23: #{xnor_conv_bn_relu.3} parent=11 // pred_region
        _
      $region24: #{xnor_conv_bn_relu.3} parent=11 // pred_fallthru
        _
    $region12: #{xnor_conv_bn_relu.3} parent=5 // pred_fallthru
      _
    %p149 = scmp.lt.s32.totalorder %s10, 2
    // Predicated region
    $region25: #{xnor_conv_bn_relu.3} parent=5 // pred_check
      %p150 = pneg %p149
    $region26: #{xnor_conv_bn_relu.3} parent=5 // pred_check_branch
      %152 = sbr.rel (%p150) target = $region28
    $region27: #{xnor_conv_bn_relu.3} parent=5 // pred_region
      // Predicated region
      $region29: #{xnor_conv_bn_relu.3} parent=27 // pred_check
        %p153 = pneg %p30
      $region30: #{xnor_conv_bn_relu.3} parent=27 // pred_check_branch
        %155 = sbr.rel (%p153) target = $region32
      $region31: #{xnor_conv_bn_relu.3} parent=27 // pred_region
        %s156 = smul.u32 32, %s10
        %p157 = scmp.lt.s32.totalorder %s156, 63
        %s158 = scalar_select %p157, %s156, 63
        %s159 = smul.addr %s158, 4
        %s160 = scalar_lea.vmem %s0, %s159
        %s161 = smul.u32 32, %s10
      $region32: #{xnor_conv_bn_relu.3} parent=27 // pred_fallthru
        _
    $region28: #{xnor_conv_bn_relu.3} parent=5 // pred_fallthru
      _
    %p162 = scmp.le.s32.totalorder 1, %s10
    %p163 = scmp.lt.s32.totalorder %s10, 3
    %p164 = pnand %p162, %p163
    %p165 = pneg %p164
    // Predicated region
    $region33: #{xnor_conv_bn_relu.3} parent=5 // pred_check
      _
    $region34: #{xnor_conv_bn_relu.3} parent=5 // pred_check_branch
      %167 = sbr.rel (%p164) target = $region36
    $region35: #{xnor_conv_bn_relu.3} parent=5 // pred_region
      %s168 = ssub.s32 %s10, 1
      %s169 = smul.u32 32, %s15
      %p170 = scmp.lt.s32.totalorder %s169, 63
      %s171 = scalar_select %p170, %s169, 63
      %s172 = smul.addr %s171, 4
      %s173 = scalar_lea.vmem %s0, %s172
      %p174 = pneg %p36
      %p175 = pneg %p33
      %p176 = pneg %p57
      %p177 = pneg %p54
      %p178 = pneg %p78
      %p179 = pneg %p75
      %p180 = pneg %p99
      %p181 = pneg %p96
      %p182 = pneg %p125
      %p183 = pneg %p122
      %s184 = smul.u32 32, %s15
      %p185 = scmp.lt.s32.totalorder %s184, 63
      %s186 = scalar_select %p185, %s184, 63
      %s187 = smul.addr %s186, 8
      %s188 = scalar_lea.vmem %s4, %s187
      %s189 = smul.u32 32, %s15
      %p190 = scmp.lt.s32.totalorder %s189, 63
      %s191 = scalar_select %p190, %s189, 63
      %s192 = smul.addr %s191, 4
      %s193 = scalar_lea.vmem %s0, %s192
      %s194 = smul.u32 32, %s15
      %s195 = smul.u32 32, %s15
      %p196 = scmp.lt.s32.totalorder %s195, 63
      %s197 = scalar_select %p196, %s195, 63
      %s198 = smul.addr %s197, 8
      %s199 = scalar_lea.vmem %s4, %s198
      %s200 = smul.u32 32, %s15
      %v202 = vld [vmem:[%s193] sm:$0xf]
      %v203 = vld [vmem:[%s193 + $0x4] sm:$0xf]
      %v204 = vld [vmem:[%s193 + $0x8] sm:$0xf]
      %v205 = vld [vmem:[%s193 + $0xc] sm:$0xf]
      %v206 = vld [vmem:[%s193 + $0x10] sm:$0xf]
      %v207 = vld [vmem:[%s193 + $0x14] sm:$0xf]
      %v208 = vld [vmem:[%s193 + $0x18] sm:$0xf]
      %v209 = vld [vmem:[%s193 + $0x1c] sm:$0xf]
      %v210 = vld [vmem:[%s193 + $0x20] sm:$0xf]
      %v211 = vld [vmem:[%s193 + $0x24] sm:$0xf]
      %v212 = vld [vmem:[%s193 + $0x28] sm:$0xf]
      %v213 = vld [vmem:[%s193 + $0x2c] sm:$0xf]
      %v214 = vld [vmem:[%s193 + $0x30] sm:$0xf]
      %v215 = vld [vmem:[%s193 + $0x34] sm:$0xf]
      %v216 = vld [vmem:[%s193 + $0x38] sm:$0xf]
      %v217 = vld [vmem:[%s193 + $0x3c] sm:$0xf]
      %v218 = vld [vmem:[%s193 + $0x40] sm:$0xf]
      %v219 = vld [vmem:[%s193 + $0x44] sm:$0xf]
      %v220 = vld [vmem:[%s193 + $0x48] sm:$0xf]
      %v221 = vld [vmem:[%s193 + $0x4c] sm:$0xf]
      %v222 = vld [vmem:[%s193 + $0x50] sm:$0xf]
      %v223 = vld [vmem:[%s193 + $0x54] sm:$0xf]
      %v224 = vld [vmem:[%s193 + $0x58] sm:$0xf]
      %v225 = vld [vmem:[%s193 + $0x5c] sm:$0xf]
      %v226 = vld [vmem:[%s193 + $0x60] sm:$0xf]
      %v227 = vld [vmem:[%s193 + $0x64] sm:$0xf]
      %v228 = vld [vmem:[%s193 + $0x68] sm:$0xf]
      %v229 = vld [vmem:[%s193 + $0x6c] sm:$0xf]
      %v230 = vld [vmem:[%s193 + $0x70] sm:$0xf]
      %v231 = vld [vmem:[%s193 + $0x74] sm:$0xf]
      %v232 = vld [vmem:[%s193 + $0x78] sm:$0xf]
      %v233 = vld [vmem:[%s193 + $0x7c] sm:$0xf]
      %v234 = vld [vmem:[%s1] sm:$0xf]
      %v235 = vld [vmem:[%s1 + $0x4] sm:$0xf]
      %v236 = vld [vmem:[%s1 + $0x8] sm:$0xf]
      %v237 = vld [vmem:[%s1 + $0xc] sm:$0xf]
      %v238 = vld [vmem:[%s1 + $0x10] sm:$0x3]
      %v271 = vunpack.c.l.b16 %v202
      %v272 = vunpack.c.l.b16 %v203
      %v273 = vunpack.c.l.b16 %v204
      %v274 = vunpack.c.l.b16 %v205
      %v275 = vunpack.c.l.b16 %v206
      %v276 = vunpack.c.l.b16 %v207
      %v277 = vunpack.c.l.b16 %v208
      %v278 = vunpack.c.l.b16 %v209
      %v279 = vunpack.c.l.b16 %v210
      %v280 = vunpack.c.l.b16 %v211
      %v281 = vunpack.c.l.b16 %v212
      %v282 = vunpack.c.l.b16 %v213
      %v283 = vunpack.c.l.b16 %v214
      %v284 = vunpack.c.l.b16 %v215
      %v285 = vunpack.c.l.b16 %v216
      %v286 = vunpack.c.l.b16 %v217
      %v287 = vunpack.c.l.b16 %v218
      %v288 = vunpack.c.l.b16 %v219
      %v289 = vunpack.c.l.b16 %v220
      %v290 = vunpack.c.l.b16 %v221
      %v291 = vunpack.c.l.b16 %v222
      %v292 = vunpack.c.l.b16 %v223
      %v293 = vunpack.c.l.b16 %v224
      %v294 = vunpack.c.l.b16 %v225
      %v295 = vunpack.c.l.b16 %v226
      %v296 = vunpack.c.l.b16 %v227
      %v297 = vunpack.c.l.b16 %v228
      %v298 = vunpack.c.l.b16 %v229
      %v299 = vunpack.c.l.b16 %v230
      %v300 = vunpack.c.l.b16 %v231
      %v301 = vunpack.c.l.b16 %v232
      %v302 = vunpack.c.l.b16 %v233
      %v303 = vpack.c.b16 %v272, %v271
      %v304 = vpack.c.b16 %v274, %v273
      %v305 = vpack.c.b16 %v276, %v275
      %v306 = vpack.c.b16 %v278, %v277
      %v307 = vpack.c.b16 %v280, %v279
      %v308 = vpack.c.b16 %v282, %v281
      %v309 = vpack.c.b16 %v284, %v283
      %v310 = vpack.c.b16 %v286, %v285
      %v311 = vpack.c.b16 %v288, %v287
      %v312 = vpack.c.b16 %v290, %v289
      %v313 = vpack.c.b16 %v292, %v291
      %v314 = vpack.c.b16 %v294, %v293
      %v315 = vpack.c.b16 %v296, %v295
      %v316 = vpack.c.b16 %v298, %v297
      %v317 = vpack.c.b16 %v300, %v299
      %v318 = vpack.c.b16 %v302, %v301
      %v324 = vunpack.c.l.b16 %v234
      %v325 = vunpack.c.l.b16 %v235
      %v326 = vunpack.c.l.b16 %v236
      %v327 = vunpack.c.l.b16 %v237
      %v328 = vunpack.c.l.b16 %v238
      %v329 = vpack.c.b16 %v325, %v324
      %v330 = vpack.c.b16 %v327, %v326
      %v331 = vpack.c.b16 %v328, %v328
      %vm334 = vcmask 293888
      %v336 = vsel %vm334, %v303, 0
      %v339 = vsel %vm334, %v304, 0
      %v342 = vsel %vm334, %v305, 0
      %v345 = vsel %vm334, %v306, 0
      %v348 = vsel %vm334, %v307, 0
      %v351 = vsel %vm334, %v308, 0
      %v354 = vsel %vm334, %v309, 0
      %v357 = vsel %vm334, %v310, 0
      %v360 = vsel %vm334, %v311, 0
      %v363 = vsel %vm334, %v312, 0
      %v366 = vsel %vm334, %v313, 0
      %v369 = vsel %vm334, %v314, 0
      %v372 = vsel %vm334, %v315, 0
      %v375 = vsel %vm334, %v316, 0
      %v378 = vsel %vm334, %v317, 0
      %v381 = vsel %vm334, %v318, 0
      %vm383 = vcmask 1041408
      %v385 = vsel %vm383, %v331, 0
      %387 = vmatprep.subr.bf16.mxu0 0
      %388 = vmatpush1.bf16.msra.mxu0 %v329
      %389 = vmatprep.subr.bf16.mxu0 0
      %390 = vmatpush1.bf16.msra.mxu0 %v330
      %391 = vmatprep.subr.bf16.mxu0 0
      %392 = vmatpush1.bf16.msra.mxu0 %v385
      %393 = vmatprep.subr.bf16.mxu0 0
      %394 = vmatpush1.bf16.msra.mxu0 0
      %395 = vmatprep.subr.bf16.mxu0 0
      %396 = vmatpush1.bf16.msra.mxu0 0
      %397 = vmatprep.subr.bf16.mxu0 0
      %398 = vmatpush1.bf16.msra.mxu0 0
      %399 = vmatprep.subr.bf16.mxu0 0
      %400 = vmatpush1.bf16.msra.mxu0 0
      %401 = vmatprep.subr.bf16.mxu0 0
      %402 = vmatpush1.bf16.msra.mxu0 0
      %403 = vmatprep.subr.bf16.mxu0 0
      %404 = vmatpush1.bf16.msra.mxu0 0
      %405 = vmatprep.subr.bf16.mxu0 0
      %406 = vmatpush1.bf16.msra.mxu0 0
      %407 = vmatprep.subr.bf16.mxu0 0
      %408 = vmatpush1.bf16.msra.mxu0 0
      %409 = vmatprep.subr.bf16.mxu0 0
      %410 = vmatpush1.bf16.msra.mxu0 0
      %411 = vmatprep.subr.bf16.mxu0 0
      %412 = vmatpush1.bf16.msra.mxu0 0
      %413 = vmatprep.subr.bf16.mxu0 0
      %414 = vmatpush1.bf16.msra.mxu0 0
      %415 = vmatprep.subr.bf16.mxu0 0
      %416 = vmatpush1.bf16.msra.mxu0 0
      %417 = vmatprep.subr.bf16.mxu0 0
      %418 = vmatpush1.bf16.msra.mxu0 0
      %419 = vmatprep.mubr.bf16.mxu0 0
      %420 = vmatmul.mubr.bf16.gmra.mrb[0].mxu0 %v336
      %v421 = vpop.f32.mrb[0].mxu0
      %v422 = vadd.f32 0.0, %v421
      %v423 = vpop.f32.mrb[0].mxu0
      %v424 = vpop.f32.mrb[0].mxu0
      %v425 = vadd.f32 0.0, %v424
      %v426 = vpop.f32.mrb[0].mxu0
      %427 = vmatprep.mubr.bf16.mxu0 0
      %428 = vmatmul.mubr.bf16.gmra.mrb[0].mxu0 %v339
      %v429 = vpop.f32.mrb[0].mxu0
      %v430 = vadd.f32 0.0, %v429
      %v431 = vpop.f32.mrb[0].mxu0
      %v432 = vpop.f32.mrb[0].mxu0
      %v433 = vadd.f32 0.0, %v432
      %v434 = vpop.f32.mrb[0].mxu0
      %435 = vmatprep.mubr.bf16.mxu0 0
      %436 = vmatmul.mubr.bf16.gmra.mrb[0].mxu0 %v342
      %v437 = vpop.f32.mrb[0].mxu0
      %v438 = vadd.f32 0.0, %v437
      %v439 = vpop.f32.mrb[0].mxu0
      %v440 = vpop.f32.mrb[0].mxu0
      %v441 = vadd.f32 0.0, %v440
      %v442 = vpop.f32.mrb[0].mxu0
      %443 = vmatprep.mubr.bf16.mxu0 0
      %444 = vmatmul.mubr.bf16.gmra.mrb[0].mxu0 %v345
      %v445 = vpop.f32.mrb[0].mxu0
      %v446 = vadd.f32 0.0, %v445
      %v447 = vpop.f32.mrb[0].mxu0
      %v448 = vpop.f32.mrb[0].mxu0
      %v449 = vadd.f32 0.0, %v448
      %v450 = vpop.f32.mrb[0].mxu0
      %451 = vmatprep.mubr.bf16.mxu0 0
      %452 = vmatmul.mubr.bf16.gmra.mrb[0].mxu0 %v348
      %v453 = vpop.f32.mrb[0].mxu0
      %v454 = vadd.f32 0.0, %v453
      %v455 = vpop.f32.mrb[0].mxu0
      %v456 = vpop.f32.mrb[0].mxu0
      %v457 = vadd.f32 0.0, %v456
      %v458 = vpop.f32.mrb[0].mxu0
      %459 = vmatprep.mubr.bf16.mxu0 0
      %460 = vmatmul.mubr.bf16.gmra.mrb[0].mxu0 %v351
      %v461 = vpop.f32.mrb[0].mxu0
      %v462 = vadd.f32 0.0, %v461
      %v463 = vpop.f32.mrb[0].mxu0
      %v464 = vpop.f32.mrb[0].mxu0
      %v465 = vadd.f32 0.0, %v464
      %v466 = vpop.f32.mrb[0].mxu0
      %467 = vmatprep.mubr.bf16.mxu0 0
      %468 = vmatmul.mubr.bf16.gmra.mrb[0].mxu0 %v354
      %v469 = vpop.f32.mrb[0].mxu0
      %v470 = vadd.f32 0.0, %v469
      %v471 = vpop.f32.mrb[0].mxu0
      %v472 = vpop.f32.mrb[0].mxu0
      %v473 = vadd.f32 0.0, %v472
      %v474 = vpop.f32.mrb[0].mxu0
      %475 = vmatprep.mubr.bf16.mxu0 0
      %476 = vmatmul.mubr.bf16.gmra.mrb[0].mxu0 %v357
      %v477 = vpop.f32.mrb[0].mxu0
      %v478 = vadd.f32 0.0, %v477
      %v479 = vpop.f32.mrb[0].mxu0
      %v480 = vpop.f32.mrb[0].mxu0
      %v481 = vadd.f32 0.0, %v480
      %v482 = vpop.f32.mrb[0].mxu0
      %483 = vmatprep.mubr.bf16.mxu0 0
      %484 = vmatmul.mubr.bf16.gmra.mrb[0].mxu0 %v360
      %v485 = vpop.f32.mrb[0].mxu0
      %v486 = vadd.f32 0.0, %v485
      %v487 = vpop.f32.mrb[0].mxu0
      %v488 = vpop.f32.mrb[0].mxu0
      %v489 = vadd.f32 0.0, %v488
      %v490 = vpop.f32.mrb[0].mxu0
      %491 = vmatprep.mubr.bf16.mxu0 0
      %492 = vmatmul.mubr.bf16.gmra.mrb[0].mxu0 %v363
      %v493 = vpop.f32.mrb[0].mxu0
      %v494 = vadd.f32 0.0, %v493
      %v495 = vpop.f32.mrb[0].mxu0
      %v496 = vpop.f32.mrb[0].mxu0
      %v497 = vadd.f32 0.0, %v496
      %v498 = vpop.f32.mrb[0].mxu0
      %499 = vmatprep.mubr.bf16.mxu0 0
      %500 = vmatmul.mubr.bf16.gmra.mrb[0].mxu0 %v366
      %v501 = vpop.f32.mrb[0].mxu0
      %v502 = vadd.f32 0.0, %v501
      %v503 = vpop.f32.mrb[0].mxu0
      %v504 = vpop.f32.mrb[0].mxu0
      %v505 = vadd.f32 0.0, %v504
      %v506 = vpop.f32.mrb[0].mxu0
      %507 = vmatprep.mubr.bf16.mxu0 0
      %508 = vmatmul.mubr.bf16.gmra.mrb[0].mxu0 %v369
      %v509 = vpop.f32.mrb[0].mxu0
      %v510 = vadd.f32 0.0, %v509
      %v511 = vpop.f32.mrb[0].mxu0
      %v512 = vpop.f32.mrb[0].mxu0
      %v513 = vadd.f32 0.0, %v512
      %v514 = vpop.f32.mrb[0].mxu0
      %515 = vmatprep.mubr.bf16.mxu0 0
      %516 = vmatmul.mubr.bf16.gmra.mrb[0].mxu0 %v372
      %v517 = vpop.f32.mrb[0].mxu0
      %v518 = vadd.f32 0.0, %v517
      %v519 = vpop.f32.mrb[0].mxu0
      %v520 = vpop.f32.mrb[0].mxu0
      %v521 = vadd.f32 0.0, %v520
      %v522 = vpop.f32.mrb[0].mxu0
      %523 = vmatprep.mubr.bf16.mxu0 0
      %524 = vmatmul.mubr.bf16.gmra.mrb[0].mxu0 %v375
      %v525 = vpop.f32.mrb[0].mxu0
      %v526 = vadd.f32 0.0, %v525
      %v527 = vpop.f32.mrb[0].mxu0
      %v528 = vpop.f32.mrb[0].mxu0
      %v529 = vadd.f32 0.0, %v528
      %v530 = vpop.f32.mrb[0].mxu0
      %531 = vmatprep.mubr.bf16.mxu0 0
      %532 = vmatmul.mubr.bf16.gmra.mrb[0].mxu0 %v378
      %v533 = vpop.f32.mrb[0].mxu0
      %v534 = vadd.f32 0.0, %v533
      %v535 = vpop.f32.mrb[0].mxu0
      %v536 = vpop.f32.mrb[0].mxu0
      %v537 = vadd.f32 0.0, %v536
      %v538 = vpop.f32.mrb[0].mxu0
      %539 = vmatprep.mubr.bf16.mxu0 0
      %540 = vmatmul.mubr.bf16.gmra.mrb[0].mxu0 %v381
      %v541 = vpop.f32.mrb[0].mxu0
      %v542 = vadd.f32 0.0, %v541
      %v543 = vpop.f32.mrb[0].mxu0
      %v544 = vpop.f32.mrb[0].mxu0
      %v545 = vadd.f32 0.0, %v544
      %v546 = vpop.f32.mrb[0].mxu0
      %547 = vdwg.mxu0
      %v548 = vld [vmem:[%s2] sm:$0x1]
      %v550 = vlaneseq
      %v551 = vshrl.u32 %v550, 7
      %v552 = vsub.s32 0, %v551
      %v553 = vrot.slane %v548, %v552
      %v555 = vmul.f32 %v422, %v553
      %v556 = vmul.f32 %v425, %v553
      %v557 = vmul.f32 %v430, %v553
      %v558 = vmul.f32 %v433, %v553
      %v559 = vmul.f32 %v438, %v553
      %v560 = vmul.f32 %v441, %v553
      %v561 = vmul.f32 %v446, %v553
      %v562 = vmul.f32 %v449, %v553
      %v563 = vmul.f32 %v454, %v553
      %v564 = vmul.f32 %v457, %v553
      %v565 = vmul.f32 %v462, %v553
      %v566 = vmul.f32 %v465, %v553
      %v567 = vmul.f32 %v470, %v553
      %v568 = vmul.f32 %v473, %v553
      %v569 = vmul.f32 %v478, %v553
      %v570 = vmul.f32 %v481, %v553
      %v571 = vmul.f32 %v486, %v553
      %v572 = vmul.f32 %v489, %v553
      %v573 = vmul.f32 %v494, %v553
      %v574 = vmul.f32 %v497, %v553
      %v575 = vmul.f32 %v502, %v553
      %v576 = vmul.f32 %v505, %v553
      %v577 = vmul.f32 %v510, %v553
      %v578 = vmul.f32 %v513, %v553
      %v579 = vmul.f32 %v518, %v553
      %v580 = vmul.f32 %v521, %v553
      %v581 = vmul.f32 %v526, %v553
      %v582 = vmul.f32 %v529, %v553
      %v583 = vmul.f32 %v534, %v553
      %v584 = vmul.f32 %v537, %v553
      %v585 = vmul.f32 %v542, %v553
      %v586 = vmul.f32 %v545, %v553
      %v587 = vld [vmem:[%s3] sm:$0x1]
      %v589 = vlaneseq
      %v590 = vshrl.u32 %v589, 7
      %v591 = vsub.s32 0, %v590
      %v592 = vrot.slane %v587, %v591
      %v594 = vadd.f32 %v555, %v592
      %v595 = vadd.f32 %v556, %v592
      %v596 = vadd.f32 %v557, %v592
      %v597 = vadd.f32 %v558, %v592
      %v598 = vadd.f32 %v559, %v592
      %v599 = vadd.f32 %v560, %v592
      %v600 = vadd.f32 %v561, %v592
      %v601 = vadd.f32 %v562, %v592
      %v602 = vadd.f32 %v563, %v592
      %v603 = vadd.f32 %v564, %v592
      %v604 = vadd.f32 %v565, %v592
      %v605 = vadd.f32 %v566, %v592
      %v606 = vadd.f32 %v567, %v592
      %v607 = vadd.f32 %v568, %v592
      %v608 = vadd.f32 %v569, %v592
      %v609 = vadd.f32 %v570, %v592
      %v610 = vadd.f32 %v571, %v592
      %v611 = vadd.f32 %v572, %v592
      %v612 = vadd.f32 %v573, %v592
      %v613 = vadd.f32 %v574, %v592
      %v614 = vadd.f32 %v575, %v592
      %v615 = vadd.f32 %v576, %v592
      %v616 = vadd.f32 %v577, %v592
      %v617 = vadd.f32 %v578, %v592
      %v618 = vadd.f32 %v579, %v592
      %v619 = vadd.f32 %v580, %v592
      %v620 = vadd.f32 %v581, %v592
      %v621 = vadd.f32 %v582, %v592
      %v622 = vadd.f32 %v583, %v592
      %v623 = vadd.f32 %v584, %v592
      %v624 = vadd.f32 %v585, %v592
      %v625 = vadd.f32 %v586, %v592
      %v626 = vmax.f32 %v594, 0.0
      %v627 = vmax.f32 %v595, 0.0
      %v628 = vmax.f32 %v596, 0.0
      %v629 = vmax.f32 %v597, 0.0
      %v630 = vmax.f32 %v598, 0.0
      %v631 = vmax.f32 %v599, 0.0
      %v632 = vmax.f32 %v600, 0.0
      %v633 = vmax.f32 %v601, 0.0
      %v634 = vmax.f32 %v602, 0.0
      %v635 = vmax.f32 %v603, 0.0
      %v636 = vmax.f32 %v604, 0.0
      %v637 = vmax.f32 %v605, 0.0
      %v638 = vmax.f32 %v606, 0.0
      %v639 = vmax.f32 %v607, 0.0
      %v640 = vmax.f32 %v608, 0.0
      %v641 = vmax.f32 %v609, 0.0
      %v642 = vmax.f32 %v610, 0.0
      %v643 = vmax.f32 %v611, 0.0
      %v644 = vmax.f32 %v612, 0.0
      %v645 = vmax.f32 %v613, 0.0
      %v646 = vmax.f32 %v614, 0.0
      %v647 = vmax.f32 %v615, 0.0
      %v648 = vmax.f32 %v616, 0.0
      %v649 = vmax.f32 %v617, 0.0
      %v650 = vmax.f32 %v618, 0.0
      %v651 = vmax.f32 %v619, 0.0
      %v652 = vmax.f32 %v620, 0.0
      %v653 = vmax.f32 %v621, 0.0
      %v654 = vmax.f32 %v622, 0.0
      %v655 = vmax.f32 %v623, 0.0
      %v656 = vmax.f32 %v624, 0.0
      %v657 = vmax.f32 %v625, 0.0
      %vm658 = vcmask 64512
      %659 = vst.msk [vmem:[%s199] sm:$0xff] %vm658, %v626
      %660 = vst.msk [vmem:[%s199 + $0x8] sm:$0xff] %vm658, %v627
      %661 = vst.msk [vmem:[%s199 + $0x10] sm:$0xff] %vm658, %v628
      %662 = vst.msk [vmem:[%s199 + $0x18] sm:$0xff] %vm658, %v629
      %663 = vst.msk [vmem:[%s199 + $0x20] sm:$0xff] %vm658, %v630
      %664 = vst.msk [vmem:[%s199 + $0x28] sm:$0xff] %vm658, %v631
      %665 = vst.msk [vmem:[%s199 + $0x30] sm:$0xff] %vm658, %v632
      %666 = vst.msk [vmem:[%s199 + $0x38] sm:$0xff] %vm658, %v633
      %667 = vst.msk [vmem:[%s199 + $0x40] sm:$0xff] %vm658, %v634
      %668 = vst.msk [vmem:[%s199 + $0x48] sm:$0xff] %vm658, %v635
      %669 = vst.msk [vmem:[%s199 + $0x50] sm:$0xff] %vm658, %v636
      %670 = vst.msk [vmem:[%s199 + $0x58] sm:$0xff] %vm658, %v637
      %671 = vst.msk [vmem:[%s199 + $0x60] sm:$0xff] %vm658, %v638
      %672 = vst.msk [vmem:[%s199 + $0x68] sm:$0xff] %vm658, %v639
      %673 = vst.msk [vmem:[%s199 + $0x70] sm:$0xff] %vm658, %v640
      %674 = vst.msk [vmem:[%s199 + $0x78] sm:$0xff] %vm658, %v641
      %675 = vst.msk [vmem:[%s199 + $0x80] sm:$0xff] %vm658, %v642
      %676 = vst.msk [vmem:[%s199 + $0x88] sm:$0xff] %vm658, %v643
      %677 = vst.msk [vmem:[%s199 + $0x90] sm:$0xff] %vm658, %v644
      %678 = vst.msk [vmem:[%s199 + $0x98] sm:$0xff] %vm658, %v645
      %679 = vst.msk [vmem:[%s199 + $0xa0] sm:$0xff] %vm658, %v646
      %680 = vst.msk [vmem:[%s199 + $0xa8] sm:$0xff] %vm658, %v647
      %681 = vst.msk [vmem:[%s199 + $0xb0] sm:$0xff] %vm658, %v648
      %682 = vst.msk [vmem:[%s199 + $0xb8] sm:$0xff] %vm658, %v649
      %683 = vst.msk [vmem:[%s199 + $0xc0] sm:$0xff] %vm658, %v650
      %684 = vst.msk [vmem:[%s199 + $0xc8] sm:$0xff] %vm658, %v651
      %685 = vst.msk [vmem:[%s199 + $0xd0] sm:$0xff] %vm658, %v652
      %686 = vst.msk [vmem:[%s199 + $0xd8] sm:$0xff] %vm658, %v653
      %687 = vst.msk [vmem:[%s199 + $0xe0] sm:$0xff] %vm658, %v654
      %688 = vst.msk [vmem:[%s199 + $0xe8] sm:$0xff] %vm658, %v655
      %689 = vst.msk [vmem:[%s199 + $0xf0] sm:$0xff] %vm658, %v656
      %690 = vst.msk [vmem:[%s199 + $0xf8] sm:$0xff] %vm658, %v657
      %s691 = smul.u32 32, %s15
      %p692 = scmp.lt.s32.totalorder %s691, 63
      %s693 = scalar_select %p692, %s691, 63
      %s694 = smul.addr %s693, 8
      %s695 = scalar_lea.vmem %s4, %s694
      // Predicated region
      $region37: #{xnor_conv_bn_relu.3} parent=35 // pred_check
        %p696 = pneg %p122
      $region38: #{xnor_conv_bn_relu.3} parent=35 // pred_check_branch
        %698 = sbr.rel (%p696) target = $region40
      $region39: #{xnor_conv_bn_relu.3} parent=35 // pred_region
        %s699 = smul.u32 32, %s15
      $region40: #{xnor_conv_bn_relu.3} parent=35 // pred_fallthru
        _
    $region36: #{xnor_conv_bn_relu.3} parent=5 // pred_fallthru
      _
    %p700 = scmp.le.s32.totalorder 2, %s10
    // Predicated region
    $region41: #{xnor_conv_bn_relu.3} parent=5 // pred_check
      %p701 = pneg %p700
    $region42: #{xnor_conv_bn_relu.3} parent=5 // pred_check_branch
      %703 = sbr.rel (%p701) target = $region44
    $region43: #{xnor_conv_bn_relu.3} parent=5 // pred_region
      %s704 = ssub.s32 %s10, 2
      // Predicated region
      $region45: #{xnor_conv_bn_relu.3} parent=43 // pred_check
        %p705 = pneg %p128
      $region46: #{xnor_conv_bn_relu.3} parent=43 // pred_check_branch
        %707 = sbr.rel (%p705) target = $region48
      $region47: #{xnor_conv_bn_relu.3} parent=43 // pred_region
        %s708 = smul.u32 32, %s16
        %p709 = scmp.lt.s32.totalorder %s708, 63
        %s710 = scalar_select %p709, %s708, 63
        %s711 = smul.addr %s710, 8
        %s712 = scalar_lea.vmem %s4, %s711
      $region48: #{xnor_conv_bn_relu.3} parent=43 // pred_fallthru
        _
    $region44: #{xnor_conv_bn_relu.3} parent=5 // pred_fallthru
      _
  $region6: #{xnor_conv_bn_relu.3} parent=0 // loop_footer
    %s14 = sadd.s32 1, %s10
  $region7: #{xnor_conv_bn_relu.3} parent=0 // loop_footer_branch
    %9 = sbr.rel target = $region3
  $region8: #{xnor_conv_bn_relu.3} parent=0 // loop_exit
    _

</llo_original>
